<compile_context>
chip_gen: v7x
topology: tpu7x:2x2x1
jax: 0.10.0
libtpu: 0.0.40
codegen_flags: <defaults>
</compile_context>

<pallas_src>
import jax
import jax.numpy as jnp
from jax import lax
from jax.experimental import pallas as pl
from jax.experimental.pallas import tpu as pltpu


def _round_up(x: int, m: int) -> int:
    return (x + m - 1) // m * m


def _interaction_kernel(drug_idx_ref, dis_idx_ref, tbl_ref, out_ref):
    # drug_idx_ref: (TP, 1) int32  VMEM   (index into rows [0, n_drug))
    # dis_idx_ref:  (TP, 1) int32  VMEM   (index already offset by n_drug)
    # tbl_ref:      (n_total, 2D)  f32    VMEM, block-diagonal fused table
    # out_ref:      (TP, D)        f32    VMEM
    tp = out_ref.shape[0]
    d = out_ref.shape[1]
    n_total = tbl_ref.shape[0]

    drug_idx = drug_idx_ref[...]                         # (TP, 1)
    dis_idx = dis_idx_ref[...]                           # (TP, 1)

    # One combined one-hot with two 1s per row: one in the drug block of
    # columns, one in the (shifted) disease block.  bf16 keeps the transient
    # small; 0/1 are exact in bf16 so the gather stays exact.
    iota = lax.broadcasted_iota(jnp.int32, (tp, n_total), 1)
    onehot = jnp.logical_or(iota == drug_idx, iota == dis_idx)
    onehot = onehot.astype(jnp.bfloat16)                 # (TP, n_total)

    # Single MXU matmul gathers both embeddings: result = [d | s].
    fused = jnp.dot(onehot, tbl_ref[...],
                    preferred_element_type=jnp.float32)  # (TP, 2D)

    drug_e = fused[:, :d]                                # (TP, D)
    dis_e = fused[:, d:]                                 # (TP, D)
    prod = drug_e * dis_e                                # (TP, D)

    # F.normalize(prod, p=2, dim=1, eps=1e-12)
    sq = jnp.sum(prod * prod, axis=-1, keepdims=True)    # (TP, 1)
    inv_norm = lax.rsqrt(jnp.maximum(sq, 1e-24))
    out_ref[...] = prod * inv_norm
    # TODO(synk): nn.Dropout(p=0.5) is train-time only; identity at inference.


def interaction_embedding(association_pairs, w_drug, w_disease, *, tp=None):
    """association_pairs: (2, P) int; w_drug: (D, n_drug); w_disease: (D, n_disease)."""
    D, n_drug = w_drug.shape
    D2, n_disease = w_disease.shape
    assert D2 == D, "drug / disease projections must share embedding_dim"
    n_total = n_drug + n_disease
    P = association_pairs.shape[1]

    # Fused block-diagonal lookup table (kept f32 for an exact gather):
    #   [ W_drug.T        0       ]
    #   [    0        W_disease.T ]      shape (n_total, 2D)
    fused_tbl = jnp.zeros((n_total, 2 * D), jnp.float32)
    fused_tbl = fused_tbl.at[:n_drug, :D].set(w_drug.T.astype(jnp.float32))
    fused_tbl = fused_tbl.at[n_drug:, D:].set(w_disease.T.astype(jnp.float32))

    # Tile size over P: multiple of 8, capped so the (TP, n_total) one-hot and
    # double-buffered (TP, D) outputs stay well inside even v7x's VMEM budget.
    if tp is None:
        tp = min(512, _round_up(P, 8))
    tp = _round_up(tp, 8)
    p_pad = _round_up(max(P, 1), tp)
    n_steps = p_pad // tp

    drug_idx = association_pairs[0, :].astype(jnp.int32)
    dis_idx = association_pairs[1, :].astype(jnp.int32) + n_drug  # offset into fused table
    pad = p_pad - P
    drug_idx = jnp.pad(drug_idx, (0, pad)).reshape(p_pad, 1)
    dis_idx = jnp.pad(dis_idx, (0, pad), constant_values=n_drug).reshape(p_pad, 1)

    out = pl.pallas_call(
        _interaction_kernel,
        out_shape=jax.ShapeDtypeStruct((p_pad, D), jnp.float32),
        grid=(n_steps,),
        in_specs=[
            pl.BlockSpec((tp, 1), lambda i: (i, 0)),          # drug indices tile
            pl.BlockSpec((tp, 1), lambda i: (i, 0)),          # disease indices tile
            pl.BlockSpec((n_total, 2 * D), lambda i: (0, 0)),  # resident fused table
        ],
        out_specs=pl.BlockSpec((tp, D), lambda i: (i, 0)),
        compiler_params=pltpu.CompilerParams(
            dimension_semantics=("parallel",),
        ),
    )(drug_idx, dis_idx, fused_tbl)
    return out[:P]


def _reference(association_pairs, w_drug, w_disease):
    drug_tbl = w_drug.T
    dis_tbl = w_disease.T
    d = drug_tbl[association_pairs[0]]
    s = dis_tbl[association_pairs[1]]
    prod = d * s
    denom = jnp.maximum(jnp.linalg.norm(prod, axis=1, keepdims=True), 1e-12)
    return prod / denom


def _make_case(key, n_drug, n_disease, embedding_dim, n_pairs):
    k_wd, k_ws, k_p0, k_p1 = jax.random.split(key, 4)
    # nn.Linear(n_in, D, bias=False).weight has shape (D, n_in).
    w_drug = jax.random.normal(k_wd, (embedding_dim, n_drug), dtype=jnp.float32) * 0.1
    w_disease = jax.random.normal(k_ws, (embedding_dim, n_disease), dtype=jnp.float32) * 0.1
    pairs = jnp.stack(
        [
            jax.random.randint(k_p0, (n_pairs,), 0, n_drug, dtype=jnp.int32),
            jax.random.randint(k_p1, (n_pairs,), 0, n_disease, dtype=jnp.int32),
        ],
        axis=0,
    )
    return pairs, w_drug, w_disease


if __name__ == "__main__":
    key = jax.random.PRNGKey(0)
    k1, k2 = jax.random.split(key)

    # Case 1: the module's demo sizes (single tile).
    n_drug, n_disease, embedding_dim, n_pairs = 16, 12, 32, 8
    pairs, w_drug, w_disease = _make_case(k1, n_drug, n_disease, embedding_dim, n_pairs)
    out = jax.block_until_ready(interaction_embedding(pairs, w_drug, w_disease))
    ref = _reference(pairs, w_drug, w_disease)
    assert out.shape == (n_pairs, embedding_dim)
    assert jnp.allclose(out, ref, atol=1e-5, rtol=1e-5), "case 1 mismatch vs reference"

    # Case 2: exercises P-tiling, the multi-step grid, and the ragged-P pad.
    n_drug2, n_disease2, embedding_dim2, n_pairs2 = 24, 20, 16, 20
    pairs2, w_drug2, w_disease2 = _make_case(k2, n_drug2, n_disease2, embedding_dim2, n_pairs2)
    out2 = jax.block_until_ready(
        interaction_embedding(pairs2, w_drug2, w_disease2, tp=8)
    )
    ref2 = _reference(pairs2, w_drug2, w_disease2)
    assert out2.shape == (n_pairs2, embedding_dim2)
    assert jnp.allclose(out2, ref2, atol=1e-5, rtol=1e-5), "case 2 mismatch vs reference"

    print("KERNEL_OK")
</pallas_src>

<mosaic_0001>
module attributes {stable_mosaic.version = 11 : i64} {
  func.func @_interaction_kernel(%arg0: i32, %arg1: memref<8x1xi32, #tpu.memory_space<vmem>>, %arg2: memref<8x1xi32, #tpu.memory_space<vmem>>, %arg3: memref<28x64xf32, #tpu.memory_space<vmem>>, %arg4: memref<8x32xf32, #tpu.memory_space<vmem>>) attributes {dimension_semantics = [#tpu.dimension_semantics<parallel>], iteration_bounds = array<i64: 1>, scalar_prefetch = 0 : i64, scratch_operands = 0 : i64, tpu.core_type = #tpu.core_type<tc>, window_params = [{transform_indices = @transform_0, window_bounds = array<i64: 8, 1>}, {transform_indices = @transform_1, window_bounds = array<i64: 8, 1>}, {pipeline_mode = #tpu.pipeline_mode<synchronous>, transform_indices = @transform_2, window_bounds = array<i64: 28, 64>}, {transform_indices = @transform_3, window_bounds = array<i64: 8, 32>}]} {
    %c0 = arith.constant 0 : index
    %c0_0 = arith.constant 0 : index
    %0 = vector.load %arg1[%c0, %c0_0] : memref<8x1xi32, #tpu.memory_space<vmem>>, vector<8x1xi32>
    %c0_1 = arith.constant 0 : index
    %c0_2 = arith.constant 0 : index
    %1 = vector.load %arg2[%c0_1, %c0_2] : memref<8x1xi32, #tpu.memory_space<vmem>>, vector<8x1xi32>
    %2 = tpu.iota {dimensions = array<i32: 1>} : vector<8x28xi32>
    %3 = vector.broadcast %0 : vector<8x1xi32> to vector<8x28xi32>
    %4 = arith.cmpi eq, %2, %3 : vector<8x28xi32>
    %5 = vector.broadcast %1 : vector<8x1xi32> to vector<8x28xi32>
    %6 = arith.cmpi eq, %2, %5 : vector<8x28xi32>
    %7 = arith.ori %4, %6 : vector<8x28xi1>
    %8 = arith.extui %7 : vector<8x28xi1> to vector<8x28xi32>
    %9 = arith.sitofp %8 : vector<8x28xi32> to vector<8x28xf32>
    %10 = arith.truncf %9 : vector<8x28xf32> to vector<8x28xbf16>
    %c0_3 = arith.constant 0 : index
    %c0_4 = arith.constant 0 : index
    %11 = vector.load %arg3[%c0_3, %c0_4] : memref<28x64xf32, #tpu.memory_space<vmem>>, vector<28x64xf32>
    %cst = arith.constant dense<0.000000e+00> : vector<8x64xf32>
    %12 = tpu.matmul %10, %11, %cst {dimension_numbers = #tpu.dot_dimension_numbers<[1], [0], [0], [1], [0, 0, 1, 1], [], []>} : vector<8x28xbf16>, vector<28x64xf32>, vector<8x64xf32> -> vector<8x64xf32>
    %13 = vector.extract_strided_slice %12 {offsets = [0, 0], sizes = [8, 32], strides = [1, 1]} : vector<8x64xf32> to vector<8x32xf32>
    %14 = vector.extract_strided_slice %12 {offsets = [0, 32], sizes = [8, 32], strides = [1, 1]} : vector<8x64xf32> to vector<8x32xf32>
    %15 = arith.mulf %13, %14 : vector<8x32xf32>
    %16 = arith.mulf %15, %15 : vector<8x32xf32>
    %cst_5 = arith.constant dense<0.000000e+00> : vector<8xf32>
    %17 = vector.multi_reduction <add>, %16, %cst_5 [1] : vector<8x32xf32> to vector<8xf32>
    %18 = vector.shape_cast %17 : vector<8xf32> to vector<8x1xf32>
    %cst_6 = arith.constant 1.000000e-24 : f32
    %19 = vector.broadcast %cst_6 : f32 to vector<8x1xf32>
    %20 = arith.maximumf %18, %19 : vector<8x1xf32>
    %21 = math.rsqrt %20 : vector<8x1xf32>
    %22 = vector.broadcast %21 : vector<8x1xf32> to vector<8x32xf32>
    %23 = arith.mulf %15, %22 : vector<8x32xf32>
    %c0_7 = arith.constant 0 : index
    %c0_8 = arith.constant 0 : index
    %24 = vector.load %arg4[%c0_7, %c0_8] : memref<8x32xf32, #tpu.memory_space<vmem>>, vector<8x32xf32>
    tpu.vector_store %arg4[%c0_7, %c0_8], %23 {strides = array<i32>} : memref<8x32xf32, #tpu.memory_space<vmem>>, vector<8x32xf32>,
    return
  }
  func.func @transform_0(%arg0: i32) -> (i32, i32) {
    %c0_i32 = arith.constant 0 : i32
    %c0_i32_0 = arith.constant 0 : i32
    return %arg0, %c0_i32 : i32, i32
  }
  func.func @transform_1(%arg0: i32) -> (i32, i32) {
    %c0_i32 = arith.constant 0 : i32
    %c0_i32_0 = arith.constant 0 : i32
    return %arg0, %c0_i32 : i32, i32
  }
  func.func @transform_2(%arg0: i32) -> (i32, i32) {
    %c0_i32 = arith.constant 0 : i32
    %c0_i32_0 = arith.constant 0 : i32
    %c0_i32_1 = arith.constant 0 : i32
    return %c0_i32, %c0_i32_0 : i32, i32
  }
  func.func @transform_3(%arg0: i32) -> (i32, i32) {
    %c0_i32 = arith.constant 0 : i32
    %c0_i32_0 = arith.constant 0 : i32
    return %arg0, %c0_i32 : i32, i32
  }
}

</mosaic_0001>

<llo_original>
// kernel: tpu_custom_call.1
$region0: #{tpu_custom_call.1}
  #allocation0 [shape = 'u32[]', space=smem, size = 0x4, offset = 0x4, fixed_abs, tag = 'smem constant byte address 0x4 - core index']
  #allocation1 [shape = 'u32[144,128]{1,0:T(1,128)}', space=vmem, size = 0x12000, scoped, tag = 'internal scratch']
  %s0 = inlined_call_operand.vmem [shape: s32[8,1], index: 0, kind: input, shape index: {}]
  %s1 = inlined_call_operand.vmem [shape: s32[8,1], index: 1, kind: input, shape index: {}]
  %s2 = inlined_call_operand.hbm [shape: f32[28,64], index: 2, kind: input, shape index: {}]
  %s3 = inlined_call_operand.hbm [shape: f32[8,32], index: 3, kind: output, shape index: {}]
  %s4 = sld [smem:[#allocation0]]
  $region26: #{tpu_custom_call.1} parent=0
    _
  %s6 = ssub.s32 1, %s4
  %s7 = scalar_select 0, %s6, %s4
  $region1: #{tpu_custom_call.1} parent=0
    #allocation2 [shape = 'u8[16384]{0}', space=vmem, size = 0x4000, scoped, tag = 'input window, operand 2, single buffered']
    #allocation3 [shape = 's32[1]{0}', space=sflag, size = 0x4, scoped, tag = 'scoped memory for tpu_custom_call.1']
    #allocation4 [shape = 's32[1]{0}', space=sflag, size = 0x4, scoped, tag = 'scoped memory for tpu_custom_call.1']
    #allocation5 [shape = 'u8[4096]{0}', space=vmem, size = 0x1000, scoped, tag = 'output window, operand 0, single buffered']
    %8 = vsyncpa [#allocation3], 0
    %9 = vsyncpa [#allocation4], 0
    // Predicated region
    $region2: #{tpu_custom_call.1} parent=1 // pred_check
      _
    $region3: #{tpu_custom_call.1} parent=1 // pred_check_branch
      %11 = sbr.rel (0) target = $region5
    $region4: #{tpu_custom_call.1} parent=1 // pred_region
      _
    $region5: #{tpu_custom_call.1} parent=1 // pred_fallthru
      _
    // Predicated region
    $region6: #{tpu_custom_call.1} parent=1 // pred_check
      _
    $region7: #{tpu_custom_call.1} parent=1 // pred_check_branch
      %13 = sbr.rel (0) target = $region9
    $region8: #{tpu_custom_call.1} parent=1 // pred_region
      _
    $region9: #{tpu_custom_call.1} parent=1 // pred_fallthru
      _
    // Predicated region
    $region10: #{tpu_custom_call.1} parent=1 // pred_check
      _
    $region11: #{tpu_custom_call.1} parent=1 // pred_check_branch
      %15 = sbr.rel (0) target = $region13
    $region12: #{tpu_custom_call.1} parent=1 // pred_region
      %s17 = ssub.s32 512, 512
      %18 = vsyncadd [#allocation3], %s17
      %s19 = sshll.u32 [#allocation2], 4
      %s20 = int_to_ptr.vmem [resolvable:$true] %s19
      %25 = dma.hbm_to_vmem [thread:$0]  %s2, 512, %s20, [#allocation3], 128, 128, 8
    $region13: #{tpu_custom_call.1} parent=1 // pred_fallthru
      _
    // Predicated region
    $region14: #{tpu_custom_call.1} parent=1 // pred_check
      _
    $region15: #{tpu_custom_call.1} parent=1 // pred_check_branch
      %27 = sbr.rel (0) target = $region17
    $region16: #{tpu_custom_call.1} parent=1 // pred_region
      %28 = dma.done [#allocation3], 512
    $region17: #{tpu_custom_call.1} parent=1 // pred_fallthru
      _
    %v30 = vld [vmem:[%s0] sm:$0xff]
    %v31 = vld [vmem:[%s1] sm:$0xff]
    %v32 = vlaneseq
    %v33 = vand.u32 %v32, 127
    %34 = vset.pattern.permute.xlu0 0
    %35 = vperm.xlu0 %34, %v30
    %v36 = vpop.permute.xlu0 %35
    %vm37 = vcmp.eq.s32.totalorder %v33, %v36
    %38 = vset.pattern.permute.xlu0 0
    %39 = vperm.xlu0 %38, %v31
    %v40 = vpop.permute.xlu0 %39
    %vm41 = vcmp.eq.s32.totalorder %v33, %v40
    %vm42 = vmor %vm37, %vm41
    %v43 = vsel %vm42, 1, 0
    %v44 = vcvt.s32.f32 %v43
    %v45 = vpack.c.bf16 %v44, %v44
    %v46 = vld [vmem:[#allocation2] sm:$0xff]
    %v47 = vld [vmem:[#allocation2 + $0x8] sm:$0xff]
    %v48 = vld [vmem:[#allocation2 + $0x10] sm:$0xff]
    %v49 = vld [vmem:[#allocation2 + $0x18] sm:$0xf]
    %vm50 = vcmask 228352
    %v52 = vsel %vm50, %v45, 0
    %vm54 = vcmask 1043456
    %v56 = vsel %vm54, %v49, 0
    %58 = vmatprep.subr.mxu0 0.0
    %59 = vmatpush1.msra.mxu0 %v46
    %60 = vmatprep.subr.mxu0 0.0
    %61 = vmatpush1.msra.mxu0 %v47
    %62 = vmatprep.subr.mxu0 0.0
    %63 = vmatpush1.msra.mxu0 %v48
    %64 = vmatprep.subr.mxu0 0.0
    %65 = vmatpush1.msra.mxu0 %v56
    %66 = vmatprep.subr.mxu0 0.0
    %67 = vmatpush1.msra.mxu0 0.0
    %68 = vmatprep.subr.mxu0 0.0
    %69 = vmatpush1.msra.mxu0 0.0
    %70 = vmatprep.subr.mxu0 0.0
    %71 = vmatpush1.msra.mxu0 0.0
    %72 = vmatprep.subr.mxu0 0.0
    %73 = vmatpush1.msra.mxu0 0.0
    %74 = vmatprep.subr.mxu0 0.0
    %75 = vmatpush1.msra.mxu0 0.0
    %76 = vmatprep.subr.mxu0 0.0
    %77 = vmatpush1.msra.mxu0 0.0
    %78 = vmatprep.subr.mxu0 0.0
    %79 = vmatpush1.msra.mxu0 0.0
    %80 = vmatprep.subr.mxu0 0.0
    %81 = vmatpush1.msra.mxu0 0.0
    %82 = vmatprep.subr.mxu0 0.0
    %83 = vmatpush1.msra.mxu0 0.0
    %84 = vmatprep.subr.mxu0 0.0
    %85 = vmatpush1.msra.mxu0 0.0
    %86 = vmatprep.subr.mxu0 0.0
    %87 = vmatpush1.msra.mxu0 0.0
    %88 = vmatprep.subr.mxu0 0.0
    %89 = vmatpush1.msra.mxu0 0.0
    %90 = vmatprep.subr.mxu0 0.0
    %91 = vmatpush1.msra.mxu0 0.0
    %92 = vmatprep.subr.mxu0 0.0
    %93 = vmatpush1.msra.mxu0 0.0
    %94 = vmatprep.subr.mxu0 0.0
    %95 = vmatpush1.msra.mxu0 0.0
    %96 = vmatprep.subr.mxu0 0.0
    %97 = vmatpush1.msra.mxu0 0.0
    %98 = vmatprep.subr.mxu0 0.0
    %99 = vmatpush1.msra.mxu0 0.0
    %100 = vmatprep.subr.mxu0 0.0
    %101 = vmatpush1.msra.mxu0 0.0
    %102 = vmatprep.subr.mxu0 0.0
    %103 = vmatpush1.msra.mxu0 0.0
    %104 = vmatprep.subr.mxu0 0.0
    %105 = vmatpush1.msra.mxu0 0.0
    %106 = vmatprep.subr.mxu0 0.0
    %107 = vmatpush1.msra.mxu0 0.0
    %108 = vmatprep.subr.mxu0 0.0
    %109 = vmatpush1.msra.mxu0 0.0
    %110 = vmatprep.subr.mxu0 0.0
    %111 = vmatpush1.msra.mxu0 0.0
    %112 = vmatprep.subr.mxu0 0.0
    %113 = vmatpush1.msra.mxu0 0.0
    %114 = vmatprep.subr.mxu0 0.0
    %115 = vmatpush1.msra.mxu0 0.0
    %116 = vmatprep.subr.mxu0 0.0
    %117 = vmatpush1.msra.mxu0 0.0
    %118 = vmatprep.subr.mxu0 0.0
    %119 = vmatpush1.msra.mxu0 0.0
    %120 = vmatprep.subr.mxu0 0.0
    %121 = vmatpush1.msra.mxu0 0.0
    %122 = vmatprep.mubr.bf16.mxu0 0
    %123 = vmatmul.mubr.bf16.gmra.mrb[0].mxu0 %v52
    %v124 = vpop.f32.mrb[0].mxu0
    %v125 = vadd.f32 0.0, %v124
    %v126 = vpop.f32.mrb[0].mxu0
    %v127 = vpop.f32.mrb[0].mxu0
    %v128 = vpop.f32.mrb[0].mxu0
    %129 = vdwg.mxu0
    %131 = vrot.lane.b32.xlu0 %v125, 96
    %v132 = vpop.permute.xlu0 %131
    %v134 = vmul.f32 %v125, %v132
    %v135 = vmul.f32 %v134, %v134
    %vm136 = vcmask 261120
    %v137 = vsel %vm136, %v135, 0.0
    %138 = vadd.xlane.f32.xlu0 %v137
    %v139 = vpop.xlane.xlu0 %138
    %v140 = vmax.f32 %v139, 1e-24
    %v141 = vrsqrt.pop %v140
    %v142 = vmul.f32 %v134, %v141
    %143 = vst.msk [vmem:[#allocation5] sm:$0xff] %vm136, %v142
    // Predicated region
    $region18: #{tpu_custom_call.1} parent=1 // pred_check
      _
    $region19: #{tpu_custom_call.1} parent=1 // pred_check_branch
      %145 = sbr.rel (0) target = $region21
    $region20: #{tpu_custom_call.1} parent=1 // pred_region
      %s147 = ssub.s32 128, 128
      %148 = vsyncadd [#allocation4], %s147
      %s150 = sshll.u32 [#allocation5], 4
      %s151 = int_to_ptr.vmem [resolvable:$true] %s150
      %153 = dma.vmem_to_hbm [thread:$0]  %s151, 128, %s3, [#allocation4]
    $region21: #{tpu_custom_call.1} parent=1 // pred_fallthru
      _
    // Predicated region
    $region22: #{tpu_custom_call.1} parent=1 // pred_check
      _
    $region23: #{tpu_custom_call.1} parent=1 // pred_check_branch
      %155 = sbr.rel (0) target = $region25
    $region24: #{tpu_custom_call.1} parent=1 // pred_region
      %156 = dma.done [#allocation4], 128
    $region25: #{tpu_custom_call.1} parent=1 // pred_fallthru
      _
    %157 = vsyncpa [#allocation3], 1
    %158 = vsyncpa [#allocation4], 1

</llo_original>
